<compile_context>
chip_gen: v5e
topology: v5e:2x2
jax: 0.10.0
libtpu: 0.0.40
codegen_flags: <defaults>
</compile_context>

<pallas_src>
import math
from functools import partial

import jax
import jax.numpy as jnp
from jax.experimental import pallas as pl
from jax.experimental.pallas import tpu as pltpu

# Original module dims.
INPUT_SIZE = 27
HIDDEN_SIZE = 64
OUTPUT_SIZE = 9

# Lane/sublane-aligned padded dims.
IN_PAD = 32      # zero-padded contraction dim of matmul 1 (numerically free)
HID_PAD = 128    # lane-dense hidden (zero-padded W1 cols / W2 rows, b1 pad = 0)
OUT_PAD = 128    # lane-dense output (padded logits masked via -1e30 in b2)

NEG_INF = -1e30  # finite "minus infinity" -> exp() underflows to exactly 0
TILE_B = 256     # batch tile; double-buffered working set far below 32 MiB


def _round_up(n, m):
    return (n + m - 1) // m * m


def policy_kernel(x_ref, w1_ref, b1_ref, w2_ref, b2_ref, o_ref):
    # linear1 + ReLU  (bf16 operands -> f32 accumulation on the MXU)
    h = jnp.dot(x_ref[...], w1_ref[...], preferred_element_type=jnp.float32)
    h = jnp.maximum(h + b1_ref[...], 0.0)

    # linear2  (bf16 MXU operands, f32 accumulation)
    logits = jnp.dot(h.astype(jnp.bfloat16), w2_ref[...],
                     preferred_element_type=jnp.float32)
    logits = logits + b2_ref[...]        # padded lanes carry -1e30

    # numerically-stable softmax over the last (feature) axis, f32 throughout
    m = jnp.max(logits, axis=-1, keepdims=True)
    e = jnp.exp(logits - m)              # padded lanes -> exp(-1e30 - m) == 0
    denom = jnp.sum(e, axis=-1, keepdims=True)
    o_ref[...] = (e * pl.reciprocal(denom, approx=True)).astype(o_ref.dtype)


def init_params(key, input_size=INPUT_SIZE, hidden_size=HIDDEN_SIZE,
                output_size=OUTPUT_SIZE):
    """PyTorch nn.Linear default init: U(-1/sqrt(fan_in), 1/sqrt(fan_in)).
    Weights stored pre-transposed as (in, out)."""
    k1, k2, k3, k4 = jax.random.split(key, 4)
    bound1 = 1.0 / math.sqrt(input_size)
    bound2 = 1.0 / math.sqrt(hidden_size)
    w1 = jax.random.uniform(k1, (input_size, hidden_size), jnp.float32,
                            -bound1, bound1)
    b1 = jax.random.uniform(k2, (hidden_size,), jnp.float32, -bound1, bound1)
    w2 = jax.random.uniform(k3, (hidden_size, output_size), jnp.float32,
                            -bound2, bound2)
    b2 = jax.random.uniform(k4, (output_size,), jnp.float32, -bound2, bound2)
    return w1, b1, w2, b2


def pad_params(w1, b1, w2, b2):
    """One-time (outside the hot path) padding + bf16 cast of the params."""
    in_size, hid = w1.shape
    _, out_size = w2.shape
    w1p = jnp.zeros((IN_PAD, HID_PAD), jnp.float32).at[:in_size, :hid].set(w1)
    b1p = jnp.zeros((1, HID_PAD), jnp.float32).at[0, :hid].set(b1)
    w2p = jnp.zeros((HID_PAD, OUT_PAD), jnp.float32).at[:hid, :out_size].set(w2)
    # bake the softmax mask for the padded output lanes into the bias
    b2p = jnp.full((1, OUT_PAD), NEG_INF, jnp.float32).at[0, :out_size].set(b2)
    return w1p.astype(jnp.bfloat16), b1p, w2p.astype(jnp.bfloat16), b2p


@jax.jit
def policy_forward(x, w1p, b1p, w2p, b2p):
    """x: (B, input_size) f32. Returns (B, OUTPUT_SIZE) softmax probabilities."""
    B, in_size = x.shape
    tile_b = TILE_B if B >= TILE_B else _round_up(max(B, 1), 8)
    b_pad = _round_up(B, tile_b)

    # zero-pad batch (sublane quantum) and the contraction dim, cast to bf16
    xp = jnp.zeros((b_pad, IN_PAD), jnp.float32).at[:B, :in_size].set(x)
    xp = xp.astype(jnp.bfloat16)

    # constant index_map -> weights/biases stay VMEM-resident across tiles
    const = lambda shape: pl.BlockSpec(shape, lambda i: (0, 0))

    out = pl.pallas_call(
        policy_kernel,
        out_shape=jax.ShapeDtypeStruct((b_pad, OUT_PAD), jnp.float32),
        grid=(b_pad // tile_b,),
        in_specs=[
            pl.BlockSpec((tile_b, IN_PAD), lambda i: (i, 0)),
            const(w1p.shape),
            const(b1p.shape),
            const(w2p.shape),
            const(b2p.shape),
        ],
        out_specs=pl.BlockSpec((tile_b, OUT_PAD), lambda i: (i, 0)),
        compiler_params=pltpu.CompilerParams(
            dimension_semantics=("parallel",)),
    )(xp, w1p, b1p, w2p, b2p)

    return out[:B, :OUTPUT_SIZE]


def policy_ref_f32(x, w1, b1, w2, b2):
    h = jnp.maximum(x @ w1 + b1, 0.0)
    logits = h @ w2 + b2
    return jax.nn.softmax(logits, axis=1)


def policy_ref_bf16(x, w1, b1, w2, b2):
    """Reference that mimics the kernel's bf16 MXU operands (f32 accumulation)."""
    f32 = lambda a: a.astype(jnp.bfloat16).astype(jnp.float32)
    h = jnp.maximum(f32(x) @ f32(w1) + b1, 0.0)
    logits = f32(h) @ f32(w2) + b2
    return jax.nn.softmax(logits, axis=1)


if __name__ == "__main__":
    key = jax.random.PRNGKey(0)
    kx, kx2, kp = jax.random.split(key, 3)

    w1, b1, w2, b2 = init_params(kp)
    params = pad_params(w1, b1, w2, b2)

    # small, module-consistent case (batch=2, padded to one 8-row tile)
    x_small = jax.random.normal(kx, (2, INPUT_SIZE), jnp.float32)
    out_small = jax.block_until_ready(policy_forward(x_small, *params))

    # batched case exercising the "parallel" batch grid (2 tiles of 256)
    x_big = jax.random.normal(kx2, (512, INPUT_SIZE), jnp.float32)
    out_big = jax.block_until_ready(policy_forward(x_big, *params))

    for x, out in ((x_small, out_small), (x_big, out_big)):
        ref_b = policy_ref_bf16(x, w1, b1, w2, b2)   # same casts as kernel
        ref_f = policy_ref_f32(x, w1, b1, w2, b2)    # pure f32 reference
        assert out.shape == (x.shape[0], OUTPUT_SIZE)
        assert bool(jnp.all(jnp.isfinite(out)))
        assert jnp.allclose(out, ref_b, atol=2e-3), \
            float(jnp.max(jnp.abs(out - ref_b)))
        assert jnp.allclose(out, ref_f, atol=2e-2), \
            float(jnp.max(jnp.abs(out - ref_f)))
        assert jnp.allclose(jnp.sum(out, axis=1), 1.0, atol=2e-3)

    print("KERNEL_OK")
</pallas_src>

<mosaic_0001>
module attributes {stable_mosaic.version = 11 : i64} {
  func.func @policy_kernel(%arg0: i32, %arg1: memref<8x32xbf16, #tpu.memory_space<vmem>>, %arg2: memref<32x128xbf16, #tpu.memory_space<vmem>>, %arg3: memref<1x128xf32, #tpu.memory_space<vmem>>, %arg4: memref<128x128xbf16, #tpu.memory_space<vmem>>, %arg5: memref<1x128xf32, #tpu.memory_space<vmem>>, %arg6: memref<8x128xf32, #tpu.memory_space<vmem>>) attributes {dimension_semantics = [#tpu.dimension_semantics<parallel>], iteration_bounds = array<i64: 1>, scalar_prefetch = 0 : i64, scratch_operands = 0 : i64, tpu.core_type = #tpu.core_type<tc>, window_params = [{transform_indices = @transform_0, window_bounds = array<i64: 8, 32>}, {pipeline_mode = #tpu.pipeline_mode<synchronous>, transform_indices = @transform_1, window_bounds = array<i64: 32, 128>}, {pipeline_mode = #tpu.pipeline_mode<synchronous>, transform_indices = @transform_2, window_bounds = array<i64: 1, 128>}, {pipeline_mode = #tpu.pipeline_mode<synchronous>, transform_indices = @transform_3, window_bounds = array<i64: 128, 128>}, {pipeline_mode = #tpu.pipeline_mode<synchronous>, transform_indices = @transform_4, window_bounds = array<i64: 1, 128>}, {transform_indices = @transform_5, window_bounds = array<i64: 8, 128>}]} {
    %c0 = arith.constant 0 : index
    %c0_0 = arith.constant 0 : index
    %0 = vector.load %arg1[%c0, %c0_0] : memref<8x32xbf16, #tpu.memory_space<vmem>>, vector<8x32xbf16>
    %c0_1 = arith.constant 0 : index
    %c0_2 = arith.constant 0 : index
    %1 = vector.load %arg2[%c0_1, %c0_2] : memref<32x128xbf16, #tpu.memory_space<vmem>>, vector<32x128xbf16>
    %cst = arith.constant dense<0.000000e+00> : vector<8x128xf32>
    %2 = tpu.matmul %0, %1, %cst {dimension_numbers = #tpu.dot_dimension_numbers<[1], [0], [0], [1], [0, 0, 1, 1], [], []>} : vector<8x32xbf16>, vector<32x128xbf16>, vector<8x128xf32> -> vector<8x128xf32>
    %c0_3 = arith.constant 0 : index
    %c0_4 = arith.constant 0 : index
    %3 = vector.load %arg3[%c0_3, %c0_4] : memref<1x128xf32, #tpu.memory_space<vmem>>, vector<1x128xf32>
    %4 = vector.broadcast %3 : vector<1x128xf32> to vector<8x128xf32>
    %5 = arith.addf %2, %4 : vector<8x128xf32>
    %cst_5 = arith.constant 0.000000e+00 : f32
    %6 = vector.broadcast %cst_5 : f32 to vector<8x128xf32>
    %7 = arith.maximumf %5, %6 : vector<8x128xf32>
    %8 = arith.truncf %7 : vector<8x128xf32> to vector<8x128xbf16>
    %c0_6 = arith.constant 0 : index
    %c0_7 = arith.constant 0 : index
    %9 = vector.load %arg4[%c0_6, %c0_7] : memref<128x128xbf16, #tpu.memory_space<vmem>>, vector<128x128xbf16>
    %cst_8 = arith.constant dense<0.000000e+00> : vector<8x128xf32>
    %10 = tpu.matmul %8, %9, %cst_8 {dimension_numbers = #tpu.dot_dimension_numbers<[1], [0], [0], [1], [0, 0, 1, 1], [], []>} : vector<8x128xbf16>, vector<128x128xbf16>, vector<8x128xf32> -> vector<8x128xf32>
    %c0_9 = arith.constant 0 : index
    %c0_10 = arith.constant 0 : index
    %11 = vector.load %arg5[%c0_9, %c0_10] : memref<1x128xf32, #tpu.memory_space<vmem>>, vector<1x128xf32>
    %12 = vector.broadcast %11 : vector<1x128xf32> to vector<8x128xf32>
    %13 = arith.addf %10, %12 : vector<8x128xf32>
    %cst_11 = arith.constant dense<0xFF800000> : vector<8xf32>
    %14 = vector.multi_reduction <maximumf>, %13, %cst_11 [1] : vector<8x128xf32> to vector<8xf32>
    %15 = vector.shape_cast %14 : vector<8xf32> to vector<8x1xf32>
    %16 = vector.broadcast %15 : vector<8x1xf32> to vector<8x128xf32>
    %17 = arith.subf %13, %16 : vector<8x128xf32>
    %18 = math.exp %17 : vector<8x128xf32>
    %cst_12 = arith.constant dense<0.000000e+00> : vector<8xf32>
    %19 = vector.multi_reduction <add>, %18, %cst_12 [1] : vector<8x128xf32> to vector<8xf32>
    %20 = vector.shape_cast %19 : vector<8xf32> to vector<8x1xf32>
    %21 = tpu.reciprocal %20 {approx = true} : vector<8x1xf32> -> vector<8x1xf32>
    %22 = vector.broadcast %21 : vector<8x1xf32> to vector<8x128xf32>
    %23 = arith.mulf %18, %22 : vector<8x128xf32>
    %c0_13 = arith.constant 0 : index
    %c0_14 = arith.constant 0 : index
    %24 = vector.load %arg6[%c0_13, %c0_14] : memref<8x128xf32, #tpu.memory_space<vmem>>, vector<8x128xf32>
    tpu.vector_store %arg6[%c0_13, %c0_14], %23 {strides = array<i32>} : memref<8x128xf32, #tpu.memory_space<vmem>>, vector<8x128xf32>,
    return
  }
  func.func @transform_0(%arg0: i32) -> (i32, i32) {
    %c0_i32 = arith.constant 0 : i32
    %c0_i32_0 = arith.constant 0 : i32
    return %arg0, %c0_i32 : i32, i32
  }
  func.func @transform_1(%arg0: i32) -> (i32, i32) {
    %c0_i32 = arith.constant 0 : i32
    %c0_i32_0 = arith.constant 0 : i32
    %c0_i32_1 = arith.constant 0 : i32
    return %c0_i32, %c0_i32_0 : i32, i32
  }
  func.func @transform_2(%arg0: i32) -> (i32, i32) {
    %c0_i32 = arith.constant 0 : i32
    %c0_i32_0 = arith.constant 0 : i32
    %c0_i32_1 = arith.constant 0 : i32
    return %c0_i32, %c0_i32_0 : i32, i32
  }
  func.func @transform_3(%arg0: i32) -> (i32, i32) {
    %c0_i32 = arith.constant 0 : i32
    %c0_i32_0 = arith.constant 0 : i32
    %c0_i32_1 = arith.constant 0 : i32
    return %c0_i32, %c0_i32_0 : i32, i32
  }
  func.func @transform_4(%arg0: i32) -> (i32, i32) {
    %c0_i32 = arith.constant 0 : i32
    %c0_i32_0 = arith.constant 0 : i32
    %c0_i32_1 = arith.constant 0 : i32
    return %c0_i32, %c0_i32_0 : i32, i32
  }
  func.func @transform_5(%arg0: i32) -> (i32, i32) {
    %c0_i32 = arith.constant 0 : i32
    %c0_i32_0 = arith.constant 0 : i32
    return %arg0, %c0_i32 : i32, i32
  }
}

</mosaic_0001>

<llo_original>
// kernel: policy_forward.1
$region0: #{policy_forward.1}
  #allocation0 [shape = 'u32[]', space=smem, size = 0x4, offset = 0x4, fixed_abs, tag = 'smem constant byte address 0x4 - core index']
  #allocation1 [shape = 'u32[72,128]{1,0:T(1,128)}', space=vmem, size = 0x9000, scoped, tag = 'internal scratch']
  %s0 = inlined_call_operand.vmem [shape: bf16[8,32], index: 0, kind: input, shape index: {}]
  %s1 = inlined_call_operand.hbm [shape: bf16[32,128], index: 1, kind: input, shape index: {}]
  %s2 = inlined_call_operand.vmem [shape: f32[1,128], index: 2, kind: input, shape index: {}]
  %s3 = inlined_call_operand.hbm [shape: bf16[128,128], index: 3, kind: input, shape index: {}]
  %s4 = inlined_call_operand.vmem [shape: f32[1,128], index: 4, kind: input, shape index: {}]
  %s5 = inlined_call_operand.vmem [shape: f32[8,128], index: 5, kind: output, shape index: {}]
  %s6 = sld [smem:[#allocation0]]
  $region38: #{policy_forward.1} parent=0
    _
  %s8 = ssub.s32 1, %s6
  %s9 = scalar_select 0, %s8, %s6
  $region1: #{policy_forward.1} parent=0
    #allocation2 [shape = 'u8[8192]{0}', space=vmem, size = 0x2000, scoped, tag = 'input window, operand 1, single buffered']
    #allocation3 [shape = 's32[1]{0}', space=sflag, size = 0x4, scoped, tag = 'scoped memory for policy_forward.1']
    #allocation4 [shape = 'u8[32768]{0}', space=vmem, size = 0x8000, scoped, tag = 'input window, operand 3, single buffered']
    #allocation5 [shape = 's32[1]{0}', space=sflag, size = 0x4, scoped, tag = 'scoped memory for policy_forward.1']
    %10 = vsyncpa [#allocation3], 0
    %11 = vsyncpa [#allocation5], 0
    // Predicated region
    $region2: #{policy_forward.1} parent=1 // pred_check
      _
    $region3: #{policy_forward.1} parent=1 // pred_check_branch
      %13 = sbr.rel (0) target = $region5
    $region4: #{policy_forward.1} parent=1 // pred_region
      _
    $region5: #{policy_forward.1} parent=1 // pred_fallthru
      _
    // Predicated region
    $region6: #{policy_forward.1} parent=1 // pred_check
      _
    $region7: #{policy_forward.1} parent=1 // pred_check_branch
      %15 = sbr.rel (0) target = $region9
    $region8: #{policy_forward.1} parent=1 // pred_region
      %17 = vsyncadd [#allocation3], 0
      %s18 = sshll.u32 %s1, 4
      %s19 = int_to_ptr.hbm [resolvable:$true] %s18
      %s20 = sshll.u32 [#allocation2], 4
      %s21 = int_to_ptr.vmem [resolvable:$true] %s20
      %26 = dma.hbm_to_vmem [thread:$0]  %s19, 256, %s21, [#allocation3], 64, 64, 4
    $region9: #{policy_forward.1} parent=1 // pred_fallthru
      _
    // Predicated region
    $region10: #{policy_forward.1} parent=1 // pred_check
      _
    $region11: #{policy_forward.1} parent=1 // pred_check_branch
      %28 = sbr.rel (0) target = $region13
    $region12: #{policy_forward.1} parent=1 // pred_region
      _
    $region13: #{policy_forward.1} parent=1 // pred_fallthru
      _
    // Predicated region
    $region14: #{policy_forward.1} parent=1 // pred_check
      _
    $region15: #{policy_forward.1} parent=1 // pred_check_branch
      %30 = sbr.rel (0) target = $region17
    $region16: #{policy_forward.1} parent=1 // pred_region
      %32 = vsyncadd [#allocation5], 0
      %s33 = sshll.u32 %s3, 4
      %s34 = int_to_ptr.hbm [resolvable:$true] %s33
      %s35 = sshll.u32 [#allocation4], 4
      %s36 = int_to_ptr.vmem [resolvable:$true] %s35
      %41 = dma.hbm_to_vmem [thread:$0]  %s34, 1024, %s36, [#allocation5], 64, 64, 4
    $region17: #{policy_forward.1} parent=1 // pred_fallthru
      _
    // Predicated region
    $region18: #{policy_forward.1} parent=1 // pred_check
      _
    $region19: #{policy_forward.1} parent=1 // pred_check_branch
      %43 = sbr.rel (0) target = $region21
    $region20: #{policy_forward.1} parent=1 // pred_region
      _
    $region21: #{policy_forward.1} parent=1 // pred_fallthru
      _
    // Predicated region
    $region22: #{policy_forward.1} parent=1 // pred_check
      _
    $region23: #{policy_forward.1} parent=1 // pred_check_branch
      %45 = sbr.rel (0) target = $region25
    $region24: #{policy_forward.1} parent=1 // pred_region
      %47 = dma.done [#allocation3], 256
    $region25: #{policy_forward.1} parent=1 // pred_fallthru
      _
    // Predicated region
    $region26: #{policy_forward.1} parent=1 // pred_check
      _
    $region27: #{policy_forward.1} parent=1 // pred_check_branch
      %49 = sbr.rel (0) target = $region29
    $region28: #{policy_forward.1} parent=1 // pred_region
      %51 = dma.done [#allocation5], 1024
    $region29: #{policy_forward.1} parent=1 // pred_fallthru
      _
    %v53 = vld [vmem:[%s0] sm:$0xf]
    %v54 = vld [vmem:[#allocation2] sm:$0xf]
    %v55 = vld [vmem:[#allocation2 + $0x4] sm:$0xf]
    %v56 = vld [vmem:[#allocation2 + $0x8] sm:$0xf]
    %v57 = vld [vmem:[#allocation2 + $0xc] sm:$0xf]
    %v58 = vld [vmem:[%s2] sm:$0x1]
    %v60 = vperm.slane %v58, 0
    %v66 = vunpack.c.l.b16 %v54
    %v67 = vunpack.c.l.b16 %v55
    %v68 = vunpack.c.l.b16 %v56
    %v69 = vunpack.c.l.b16 %v57
    %v70 = vpack.c.b16 %v67, %v66
    %v71 = vpack.c.b16 %v69, %v68
    %vm74 = vcmask 261120
    %v76 = vsel %vm74, %v53, 0
    %78 = vmatpush.bf16.msra.mxu0 0
    %79 = vmatpush.bf16.msra.mxu0 0
    %80 = vmatpush.bf16.msra.mxu0 0
    %81 = vmatpush.bf16.msra.mxu0 0
    %82 = vmatpush.bf16.msra.mxu0 0
    %83 = vmatpush.bf16.msra.mxu0 0
    %84 = vmatpush.bf16.msra.mxu0 %v71
    %85 = vmatpush.bf16.msra.mxu0 %v70
    %86 = vmatmul.bf16.gmra.mxu0 %v76
    %v87 = vpop.f32.mrf.mxu0
    %v88 = vadd.f32 %v60, %v87
    %v89 = vpop.f32.mrf.mxu0
    %90 = vdwg.mxu0
    %v91 = vmax.f32 %v88, 0.0
    %v92 = vpack.c.bf16 %v91, %v91
    %v93 = vld [vmem:[#allocation4] sm:$0xf]
    %v94 = vld [vmem:[#allocation4 + $0x4] sm:$0xf]
    %v95 = vld [vmem:[#allocation4 + $0x8] sm:$0xf]
    %v96 = vld [vmem:[#allocation4 + $0xc] sm:$0xf]
    %v97 = vld [vmem:[#allocation4 + $0x10] sm:$0xf]
    %v98 = vld [vmem:[#allocation4 + $0x14] sm:$0xf]
    %v99 = vld [vmem:[#allocation4 + $0x18] sm:$0xf]
    %v100 = vld [vmem:[#allocation4 + $0x1c] sm:$0xf]
    %v101 = vld [vmem:[#allocation4 + $0x20] sm:$0xf]
    %v102 = vld [vmem:[#allocation4 + $0x24] sm:$0xf]
    %v103 = vld [vmem:[#allocation4 + $0x28] sm:$0xf]
    %v104 = vld [vmem:[#allocation4 + $0x2c] sm:$0xf]
    %v105 = vld [vmem:[#allocation4 + $0x30] sm:$0xf]
    %v106 = vld [vmem:[#allocation4 + $0x34] sm:$0xf]
    %v107 = vld [vmem:[#allocation4 + $0x38] sm:$0xf]
    %v108 = vld [vmem:[#allocation4 + $0x3c] sm:$0xf]
    %v109 = vld [vmem:[%s4] sm:$0x1]
    %v111 = vperm.slane %v109, 0
    %v129 = vunpack.c.l.b16 %v93
    %v130 = vunpack.c.l.b16 %v94
    %v131 = vunpack.c.l.b16 %v95
    %v132 = vunpack.c.l.b16 %v96
    %v133 = vunpack.c.l.b16 %v97
    %v134 = vunpack.c.l.b16 %v98
    %v135 = vunpack.c.l.b16 %v99
    %v136 = vunpack.c.l.b16 %v100
    %v137 = vunpack.c.l.b16 %v101
    %v138 = vunpack.c.l.b16 %v102
    %v139 = vunpack.c.l.b16 %v103
    %v140 = vunpack.c.l.b16 %v104
    %v141 = vunpack.c.l.b16 %v105
    %v142 = vunpack.c.l.b16 %v106
    %v143 = vunpack.c.l.b16 %v107
    %v144 = vunpack.c.l.b16 %v108
    %v145 = vpack.c.b16 %v130, %v129
    %v146 = vpack.c.b16 %v132, %v131
    %v147 = vpack.c.b16 %v134, %v133
    %v148 = vpack.c.b16 %v136, %v135
    %v149 = vpack.c.b16 %v138, %v137
    %v150 = vpack.c.b16 %v140, %v139
    %v151 = vpack.c.b16 %v142, %v141
    %v152 = vpack.c.b16 %v144, %v143
    %161 = vmatpush.bf16.msra.mxu0 %v152
    %162 = vmatpush.bf16.msra.mxu0 %v151
    %163 = vmatpush.bf16.msra.mxu0 %v150
    %164 = vmatpush.bf16.msra.mxu0 %v149
    %165 = vmatpush.bf16.msra.mxu0 %v148
    %166 = vmatpush.bf16.msra.mxu0 %v147
    %167 = vmatpush.bf16.msra.mxu0 %v146
    %168 = vmatpush.bf16.msra.mxu0 %v145
    %169 = vmatmul.bf16.gmra.mxu0 %v92
    %v170 = vpop.f32.mrf.mxu0
    %v171 = vadd.f32 %v111, %v170
    %v172 = vpop.f32.mrf.mxu0
    %173 = vdwg.mxu0
    %174 = vmax.xlane.f32.xlu0 %v171
    %v175 = vpop.xlane.xlu0 %174
    %v176 = vsub.f32 %v171, %v175
    %v177 = vmul.f32 %v176, 1.442695
    %v178 = vpow.pop %v177
    %179 = vadd.xlane.f32.xlu0 %v178
    %v180 = vpop.xlane.xlu0 %179
    %v181 = vrcp.pop %v180
    %v182 = vmul.f32 %v178, %v181
    %183 = vst [vmem:[%s5] sm:$0xff] %v182
    // Predicated region
    $region30: #{policy_forward.1} parent=1 // pred_check
      _
    $region31: #{policy_forward.1} parent=1 // pred_check_branch
      %185 = sbr.rel (0) target = $region33
    $region32: #{policy_forward.1} parent=1 // pred_region
      _
    $region33: #{policy_forward.1} parent=1 // pred_fallthru
      _
    // Predicated region
    $region34: #{policy_forward.1} parent=1 // pred_check
      _
    $region35: #{policy_forward.1} parent=1 // pred_check_branch
      %187 = sbr.rel (0) target = $region37
    $region36: #{policy_forward.1} parent=1 // pred_region
      _
    $region37: #{policy_forward.1} parent=1 // pred_fallthru
      _
    %188 = vsyncpa [#allocation3], 1
    %189 = vsyncpa [#allocation5], 1

</llo_original>
